<compile_context>
chip_gen: v7x
topology: tpu7x:2x2x1
jax: 0.10.0
libtpu: 0.0.40
codegen_flags: <defaults>
</compile_context>

<pallas_src>
import functools

import jax
import jax.numpy as jnp
from jax import lax
from jax.experimental import pallas as pl
from jax.experimental.pallas import tpu as pltpu

LARGE_NUM = 1.0e9


def _make_loss_kernel(B, total_cols, TC, temp, normalize):
    """total_cols = 2B rows of feats; TC = lane-block of 'key' columns."""
    inv_t2 = 1.0 / (float(temp) ** 2.0)
    inv_2t2 = 0.5 * inv_t2

    def _gram(feats_ref, j):
        xq = feats_ref[...]                                # (2B, Dp), MXU dtype
        if TC == total_cols:
            xk = xq
        else:
            col0 = pl.multiple_of(j * TC, TC)
            xk = feats_ref[pl.ds(col0, TC), :]             # key rows of block j
        # Single gram block on the MXU, f32 accumulation.
        return lax.dot_general(xq, xk, (((1,), (1,)), ((), ())),
                               preferred_element_type=jnp.float32)  # (2B, TC)

    def _finish(logits, zinv, j, out_ref):
        # Global row index minus global column index, built once.
        r = lax.broadcasted_iota(jnp.int32, (total_cols, TC), 0)
        c = lax.broadcasted_iota(jnp.int32, (total_cols, TC), 1)
        d = r - (c + j * TC)
        partner = jnp.abs(d) == B                          # positive pair i<->i+B
        diag = d == 0                                      # self-similarity

        # Per-column lane-dense reductions (XLU; free slot vs the VALU chain).
        pos = jnp.sum(jnp.where(partner, logits, 0.0), axis=0, keepdims=True)
        diag_l = jnp.sum(jnp.where(diag, logits, 0.0), axis=0, keepdims=True)
        e = jnp.exp(logits)
        total = jnp.sum(e, axis=0, keepdims=True)

        q_attr = jnp.exp(pos)
        # Exact exclusion of self + positive pair, no keep-mask select over e.
        sum_rep = total - jnp.exp(diag_l) - q_attr
        # Per-column loss contribution: -pos + sum_rep / Z_hat (1/Z precomputed).
        contrib = sum_rep * zinv - pos

        # Packed lane-dense output block.
        out_ref[0:1, :] = q_attr
        out_ref[1:2, :] = sum_rep
        out_ref[2:3, :] = contrib

    if normalize:
        def kernel(feats_ref, zinv_ref, out_ref):
            j = pl.program_id(0)
            gram = _gram(feats_ref, j)
            # Rows are unit-norm: sqd = 2 - 2*gram  =>  logits = (gram - 1)/t^2.
            logits = gram * inv_t2 - inv_t2
            _finish(logits, zinv_ref[...], j, out_ref)
    else:
        def kernel(feats_ref, ncol_ref, nrow_ref, zinv_ref, out_ref):
            j = pl.program_id(0)
            gram = _gram(feats_ref, j)
            # Exact f32 norms from the wrapper (never from a bf16 gram diag).
            sqd = jnp.maximum(ncol_ref[...] + nrow_ref[...] - 2.0 * gram, 0.0)
            logits = -sqd * inv_2t2
            _finish(logits, zinv_ref[...], j, out_ref)

    return kernel


def _vmem_limit_bytes():
    """~75% of physical VMEM (v5e/v6e: ~96 MiB, v7x: ~48 MiB); safe fallback."""
    try:
        info = pltpu.get_tpu_info()
        cap = getattr(info, "vmem_capacity_bytes", None)
        if cap:
            return int(cap) * 3 // 4
    except Exception:
        pass
    return 48 * 1024 * 1024


@functools.partial(
    jax.jit,
    static_argnames=("N", "rho", "alpha", "single_s", "temp", "normalize",
                     "mxu_dtype", "col_block"),
)
def exponential_loss(feats, feats_idx, s_inv, *, N, rho, alpha, single_s, temp,
                     normalize=True, mxu_dtype=jnp.bfloat16, col_block=None):
    """Returns (loss, updated_s_inv) -- functional equivalent of forward()."""
    two_b, D = feats.shape
    B = two_b // 2

    if single_s:
        feats_idx = jnp.zeros((), jnp.int32)

    # ---- hoisted prep: normalize once, cast once, pad D to a lane multiple ----
    x32 = feats.astype(jnp.float32)
    if normalize:
        nrm = jnp.sqrt(jnp.sum(x32 * x32, axis=1, keepdims=True))
        x32 = x32 / jnp.maximum(nrm, 1e-12)                 # == F.normalize
        norm_args = ()
    else:
        sq = jnp.sum(x32 * x32, axis=1, keepdims=True)      # exact f32 ||x||^2
        norm_args = (sq, sq.reshape(1, two_b))

    feats_mxu = x32.astype(mxu_dtype)
    if D % 128 != 0:
        feats_mxu = jnp.pad(feats_mxu, ((0, 0), (0, (-D) % 128)))
    Dp = feats_mxu.shape[1]

    # Z_hat = s_inv[idx] / N^2 * (2B - 2); pass its reciprocal, lane-major,
    # duplicated for the a-rows and b-rows (both use Z_hat[i]).
    z_hat = s_inv[feats_idx] / (float(N) ** 2.0) * (2.0 * B - 2.0)
    zinv = jnp.broadcast_to(jnp.reshape(1.0 / z_hat, (-1,)), (B,))
    zinv_lane = jnp.concatenate([zinv, zinv]).reshape(1, two_b).astype(jnp.float32)

    # Column (key) blocking. Default: two 128-aligned lane blocks when possible
    # so the "parallel" axis can be split across v7x's two TensorCores.
    if col_block is None:
        TC = two_b // 2 if (two_b >= 256 and two_b % 256 == 0) else two_b
    elif col_block >= two_b:
        TC = two_b
    else:
        assert two_b % col_block == 0 and col_block % 128 == 0
        TC = col_block
    grid = (two_b // TC,)

    kernel = _make_loss_kernel(B, two_b, TC, float(temp), bool(normalize))

    # feats block never changes across the grid -> single-buffer it.
    feats_spec = pl.BlockSpec((two_b, Dp), lambda j: (0, 0),
                              pipeline_mode=pl.Buffered(1))
    zinv_spec = pl.BlockSpec((1, TC), lambda j: (0, j))
    if normalize:
        in_specs = [feats_spec, zinv_spec]
        args = (feats_mxu, zinv_lane)
    else:
        in_specs = [feats_spec,
                    pl.BlockSpec((two_b, 1), lambda j: (0, 0)),
                    pl.BlockSpec((1, TC), lambda j: (0, j)),
                    zinv_spec]
        args = (feats_mxu, norm_args[0], norm_args[1], zinv_lane)

    packed = pl.pallas_call(
        kernel,
        out_shape=jax.ShapeDtypeStruct((3, two_b), jnp.float32),
        grid=grid,
        in_specs=in_specs,
        out_specs=pl.BlockSpec((3, TC), lambda j: (0, j)),
        compiler_params=pltpu.CompilerParams(
            dimension_semantics=("parallel",),
            vmem_limit_bytes=_vmem_limit_bytes()),
    )(*args)

    q_attr_a = packed[0, :B]
    q_attr_b = packed[0, B:]
    sum_rep_a = packed[1, :B]
    sum_rep_b = packed[1, B:]
    loss = jnp.sum(packed[2]) / (2.0 * B)

    # ---- update_s (no-grad buffer update): plain JAX glue, functional form ----
    E_attr_a, E_attr_b = q_attr_a, q_attr_b
    E_rep_a = sum_rep_a / (2.0 * B - 2.0)
    E_rep_b = sum_rep_b / (2.0 * B - 2.0)
    if single_s:
        E_attr_a = jnp.sum(E_attr_a) / B
        E_attr_b = jnp.sum(E_attr_b) / B
        E_rep_a = jnp.sum(E_rep_a) / B
        E_rep_b = jnp.sum(E_rep_b) / B
    xi_a = alpha * E_attr_a + (1.0 - alpha) * E_rep_a
    xi_b = alpha * E_attr_b + (1.0 - alpha) * E_rep_b
    s_g = s_inv[feats_idx]
    s_inv_a = rho * s_g + (1.0 - rho) * (float(N) ** 2.0) * xi_a
    s_inv_b = rho * s_g + (1.0 - rho) * (float(N) ** 2.0) * xi_b
    # TODO(synk): duplicate entries in feats_idx are last-write-wins (same
    # ordering caveat as the in-place torch scatter).
    new_s_inv = s_inv.at[feats_idx].set((s_inv_a + s_inv_b) / 2.0)

    return loss, new_s_inv


def reference_loss(feats, feats_idx, s_inv, *, N, temp, single_s, normalize=True):
    """Pure-JAX transcription of the PyTorch forward() (loss only)."""
    B = feats.shape[0] // 2
    if normalize:
        feats = feats / jnp.maximum(
            jnp.linalg.norm(feats, axis=1, keepdims=True), 1e-12)
    a, b = feats[:B], feats[B:]

    def cdist2(u, v):
        return jnp.sum((u[:, None, :] - v[None, :, :]) ** 2, axis=-1)

    masks = jnp.eye(B, dtype=jnp.float32)
    l_aa = -cdist2(a, a) / (2.0 * temp ** 2.0) - masks * LARGE_NUM
    l_bb = -cdist2(b, b) / (2.0 * temp ** 2.0) - masks * LARGE_NUM
    l_ab = -cdist2(a, b) / (2.0 * temp ** 2.0)
    l_ba = -cdist2(b, a) / (2.0 * temp ** 2.0)
    pos_a = jnp.diag(l_ab)
    pos_b = jnp.diag(l_ba)
    l_ab = l_ab - masks * LARGE_NUM
    l_ba = l_ba - masks * LARGE_NUM
    logits_a = jnp.concatenate([l_ab, l_aa], axis=1)
    logits_b = jnp.concatenate([l_ba, l_bb], axis=1)
    attr_a = -pos_a
    attr_b = -pos_b
    q_rep_a = jnp.exp(logits_a)
    q_rep_b = jnp.exp(logits_b)
    idx = 0 if single_s else feats_idx
    Z_hat = s_inv[idx] / (float(N) ** 2.0) * (2 * B - 2)
    rep_a = jnp.sum(q_rep_a / jnp.reshape(Z_hat, (-1, 1)), axis=1)
    rep_b = jnp.sum(q_rep_b / jnp.reshape(Z_hat, (-1, 1)), axis=1)
    loss_a = attr_a.mean() + rep_a.mean()
    loss_b = attr_b.mean() + rep_b.mean()
    return (loss_a + loss_b) / 2.0


if __name__ == "__main__":
    B, D, N = 8, 32, 64
    rho, alpha, s_init, temp = 0.9, 0.5, 2.0, 0.5
    single_s = False

    key = jax.random.PRNGKey(0)
    k1, k2 = jax.random.split(key)
    feats = jax.random.normal(k1, (2 * B, D), dtype=jnp.float32)
    feats_idx = jax.random.randint(k2, (B,), 0, N, dtype=jnp.int32)
    s_inv = jnp.zeros((N,), jnp.float32) + 1.0 / s_init   # deterministic buffer init

    # --- normalize=True (module default): bf16 MXU feed + f32 bit-accuracy feed ---
    ref_n = float(reference_loss(feats, feats_idx, s_inv,
                                 N=N, temp=temp, single_s=single_s, normalize=True))
    loss_bf16, s_bf16 = exponential_loss(
        feats, feats_idx, s_inv,
        N=N, rho=rho, alpha=alpha, single_s=single_s, temp=temp,
        normalize=True, mxu_dtype=jnp.bfloat16)
    loss_f32, s_f32 = exponential_loss(
        feats, feats_idx, s_inv,
        N=N, rho=rho, alpha=alpha, single_s=single_s, temp=temp,
        normalize=True, mxu_dtype=jnp.float32)

    # --- normalize=False path (f32 feed: bf16 gram risks cancellation here) ---
    ref_u = float(reference_loss(feats, feats_idx, s_inv,
                                 N=N, temp=temp, single_s=single_s, normalize=False))
    loss_u, s_u = exponential_loss(
        feats, feats_idx, s_inv,
        N=N, rho=rho, alpha=alpha, single_s=single_s, temp=temp,
        normalize=False, mxu_dtype=jnp.float32)

    jax.block_until_ready((loss_bf16, s_bf16, loss_f32, s_f32, loss_u, s_u))

    assert abs(float(loss_f32) - ref_n) < 1e-3 * max(1.0, abs(ref_n)), (
        float(loss_f32), ref_n)
    assert abs(float(loss_bf16) - ref_n) < 2e-2 * max(1.0, abs(ref_n)), (
        float(loss_bf16), ref_n)
    assert abs(float(loss_u) - ref_u) < 1e-3 * max(1.0, abs(ref_u)), (
        float(loss_u), ref_u)

    print("KERNEL_OK")
</pallas_src>

<mosaic_0001>
module attributes {stable_mosaic.version = 11 : i64} {
  func.func @kernel(%arg0: i32, %arg1: memref<16x128xbf16, #tpu.memory_space<vmem>>, %arg2: memref<1x16xf32, #tpu.memory_space<vmem>>, %arg3: memref<3x16xf32, #tpu.memory_space<vmem>>) attributes {dimension_semantics = [#tpu.dimension_semantics<parallel>], iteration_bounds = array<i64: 1>, scalar_prefetch = 0 : i64, scratch_operands = 0 : i64, tpu.core_type = #tpu.core_type<tc>, window_params = [{pipeline_mode = #tpu.pipeline_mode<synchronous>, transform_indices = @transform_0, window_bounds = array<i64: 16, 128>}, {transform_indices = @transform_1, window_bounds = array<i64: 1, 16>}, {transform_indices = @transform_2, window_bounds = array<i64: 3, 16>}]} {
    %c0 = arith.constant 0 : index
    %c0_0 = arith.constant 0 : index
    %0 = vector.load %arg1[%c0, %c0_0] : memref<16x128xbf16, #tpu.memory_space<vmem>>, vector<16x128xbf16>
    %cst = arith.constant dense<0.000000e+00> : vector<16x16xf32>
    %1 = tpu.matmul %0, %0, %cst {dimension_numbers = #tpu.dot_dimension_numbers<[1], [1], [0], [0], [0, 0, 1, 0], [], []>} : vector<16x128xbf16>, vector<16x128xbf16>, vector<16x16xf32> -> vector<16x16xf32>
    %cst_1 = arith.constant 4.000000e+00 : f32
    %2 = vector.broadcast %cst_1 : f32 to vector<16x16xf32>
    %3 = arith.mulf %1, %2 : vector<16x16xf32>
    %cst_2 = arith.constant 4.000000e+00 : f32
    %4 = vector.broadcast %cst_2 : f32 to vector<16x16xf32>
    %5 = arith.subf %3, %4 : vector<16x16xf32>
    %c0_3 = arith.constant 0 : index
    %c0_4 = arith.constant 0 : index
    %6 = vector.load %arg2[%c0_3, %c0_4] : memref<1x16xf32, #tpu.memory_space<vmem>>, vector<1x16xf32>
    %7 = tpu.iota {dimensions = array<i32: 0>} : vector<16x16xi32>
    %8 = tpu.iota {dimensions = array<i32: 1>} : vector<16x16xi32>
    %c16_i32 = arith.constant 16 : i32
    %9 = arith.muli %arg0, %c16_i32 : i32
    %10 = vector.broadcast %9 : i32 to vector<16x16xi32>
    %11 = arith.addi %8, %10 : vector<16x16xi32>
    %12 = arith.subi %7, %11 : vector<16x16xi32>
    %13 = math.absi %12 : vector<16x16xi32>
    %c8_i32 = arith.constant 8 : i32
    %14 = vector.broadcast %c8_i32 : i32 to vector<16x16xi32>
    %15 = arith.cmpi eq, %13, %14 : vector<16x16xi32>
    %c0_i32 = arith.constant 0 : i32
    %16 = vector.broadcast %c0_i32 : i32 to vector<16x16xi32>
    %17 = arith.cmpi eq, %12, %16 : vector<16x16xi32>
    %cst_5 = arith.constant 0.000000e+00 : f32
    %18 = vector.broadcast %cst_5 : f32 to vector<16x16xf32>
    %19 = arith.select %15, %5, %18 : vector<16x16xi1>, vector<16x16xf32>
    %cst_6 = arith.constant dense<0.000000e+00> : vector<16xf32>
    %20 = vector.multi_reduction <add>, %19, %cst_6 [0] : vector<16x16xf32> to vector<16xf32>
    %21 = vector.shape_cast %20 : vector<16xf32> to vector<1x16xf32>
    %cst_7 = arith.constant 0.000000e+00 : f32
    %22 = vector.broadcast %cst_7 : f32 to vector<16x16xf32>
    %23 = arith.select %17, %5, %22 : vector<16x16xi1>, vector<16x16xf32>
    %cst_8 = arith.constant dense<0.000000e+00> : vector<16xf32>
    %24 = vector.multi_reduction <add>, %23, %cst_8 [0] : vector<16x16xf32> to vector<16xf32>
    %25 = vector.shape_cast %24 : vector<16xf32> to vector<1x16xf32>
    %26 = math.exp %5 : vector<16x16xf32>
    %cst_9 = arith.constant dense<0.000000e+00> : vector<16xf32>
    %27 = vector.multi_reduction <add>, %26, %cst_9 [0] : vector<16x16xf32> to vector<16xf32>
    %28 = vector.shape_cast %27 : vector<16xf32> to vector<1x16xf32>
    %29 = math.exp %21 : vector<1x16xf32>
    %30 = math.exp %25 : vector<1x16xf32>
    %31 = arith.subf %28, %30 : vector<1x16xf32>
    %32 = arith.subf %31, %29 : vector<1x16xf32>
    %33 = arith.mulf %32, %6 : vector<1x16xf32>
    %34 = arith.subf %33, %21 : vector<1x16xf32>
    %c0_10 = arith.constant 0 : index
    %c0_11 = arith.constant 0 : index
    %35 = vector.load %arg3[%c0_10, %c0_11] : memref<3x16xf32, #tpu.memory_space<vmem>>, vector<1x16xf32>
    tpu.vector_store %arg3[%c0_10, %c0_11], %29 {strides = array<i32>} : memref<3x16xf32, #tpu.memory_space<vmem>>, vector<1x16xf32>,
    %c1 = arith.constant 1 : index
    %c0_12 = arith.constant 0 : index
    %36 = vector.load %arg3[%c1, %c0_12] : memref<3x16xf32, #tpu.memory_space<vmem>>, vector<1x16xf32>
    tpu.vector_store %arg3[%c1, %c0_12], %32 {strides = array<i32>} : memref<3x16xf32, #tpu.memory_space<vmem>>, vector<1x16xf32>,
    %c2 = arith.constant 2 : index
    %c0_13 = arith.constant 0 : index
    %37 = vector.load %arg3[%c2, %c0_13] : memref<3x16xf32, #tpu.memory_space<vmem>>, vector<1x16xf32>
    tpu.vector_store %arg3[%c2, %c0_13], %34 {strides = array<i32>} : memref<3x16xf32, #tpu.memory_space<vmem>>, vector<1x16xf32>,
    return
  }
  func.func @transform_0(%arg0: i32) -> (i32, i32) {
    %c0_i32 = arith.constant 0 : i32
    %c0_i32_0 = arith.constant 0 : i32
    %c0_i32_1 = arith.constant 0 : i32
    return %c0_i32, %c0_i32_0 : i32, i32
  }
  func.func @transform_1(%arg0: i32) -> (i32, i32) {
    %c0_i32 = arith.constant 0 : i32
    %c0_i32_0 = arith.constant 0 : i32
    return %c0_i32, %arg0 : i32, i32
  }
  func.func @transform_2(%arg0: i32) -> (i32, i32) {
    %c0_i32 = arith.constant 0 : i32
    %c0_i32_0 = arith.constant 0 : i32
    return %c0_i32, %arg0 : i32, i32
  }
}

</mosaic_0001>

<llo_original>
// kernel: exponential_loss.1
$region0: #{exponential_loss.1}
  #allocation0 [shape = 'u32[]', space=smem, size = 0x4, offset = 0x4, fixed_abs, tag = 'smem constant byte address 0x4 - core index']
  #allocation1 [shape = 'u32[144,128]{1,0:T(1,128)}', space=vmem, size = 0x12000, scoped, tag = 'internal scratch']
  %s0 = inlined_call_operand.vmem [shape: bf16[16,128], index: 0, kind: input, shape index: {}]
  %s1 = inlined_call_operand.vmem [shape: f32[1,16], index: 1, kind: input, shape index: {}]
  %s2 = inlined_call_operand.vmem [shape: f32[3,16], index: 2, kind: output, shape index: {}]
  %s3 = sld [smem:[#allocation0]]
  $region18: #{exponential_loss.1} parent=0
    _
  %s5 = ssub.s32 1, %s3
  %s6 = scalar_select 0, %s5, %s3
  // Predicated region
  $region2: #{exponential_loss.1} parent=0 // pred_check
    _
  $region3: #{exponential_loss.1} parent=0 // pred_check_branch
    %8 = sbr.rel (0) target = $region5
  $region4: #{exponential_loss.1} parent=0 // pred_region
    _
  $region5: #{exponential_loss.1} parent=0 // pred_fallthru
    _
  // Predicated region
  $region6: #{exponential_loss.1} parent=0 // pred_check
    _
  $region7: #{exponential_loss.1} parent=0 // pred_check_branch
    %10 = sbr.rel (0) target = $region9
  $region8: #{exponential_loss.1} parent=0 // pred_region
    _
  $region9: #{exponential_loss.1} parent=0 // pred_fallthru
    _
  %v12 = vld [vmem:[%s0] sm:$0xf]
  %v13 = vld [vmem:[%s0 + $0x4] sm:$0xf]
  %v16 = vunpack.c.l.b16 %v12
  %v17 = vunpack.c.l.b16 %v13
  %v18 = vpack.c.b16 %v17, %v16
  %20 = vmatprep.subr.bf16.mxu0 0
  %21 = vmatpush1.bf16.xpose.msra.mxu0 %v18
  %22 = vmatprep.subr.bf16.mxu0 0
  %23 = vmatpush1.bf16.xpose.msra.mxu0 0
  %24 = vmatprep.subr.bf16.mxu0 0
  %25 = vmatpush1.bf16.xpose.msra.mxu0 0
  %26 = vmatprep.subr.bf16.mxu0 0
  %27 = vmatpush1.bf16.xpose.msra.mxu0 0
  %28 = vmatprep.subr.bf16.mxu0 0
  %29 = vmatpush1.bf16.xpose.msra.mxu0 0
  %30 = vmatprep.subr.bf16.mxu0 0
  %31 = vmatpush1.bf16.xpose.msra.mxu0 0
  %32 = vmatprep.subr.bf16.mxu0 0
  %33 = vmatpush1.bf16.xpose.msra.mxu0 0
  %34 = vmatprep.subr.bf16.mxu0 0
  %35 = vmatpush1.bf16.xpose.msra.mxu0 0
  %36 = vmatprep.subr.bf16.mxu0 0
  %37 = vmatpush1.bf16.xpose.msra.mxu0 0
  %38 = vmatprep.subr.bf16.mxu0 0
  %39 = vmatpush1.bf16.xpose.msra.mxu0 0
  %40 = vmatprep.subr.bf16.mxu0 0
  %41 = vmatpush1.bf16.xpose.msra.mxu0 0
  %42 = vmatprep.subr.bf16.mxu0 0
  %43 = vmatpush1.bf16.xpose.msra.mxu0 0
  %44 = vmatprep.subr.bf16.mxu0 0
  %45 = vmatpush1.bf16.xpose.msra.mxu0 0
  %46 = vmatprep.subr.bf16.mxu0 0
  %47 = vmatpush1.bf16.xpose.msra.mxu0 0
  %48 = vmatprep.subr.bf16.mxu0 0
  %49 = vmatpush1.bf16.xpose.msra.mxu0 0
  %50 = vmatprep.subr.bf16.mxu0 0
  %51 = vmatpush1.bf16.xpose.msra.mxu0 0
  %52 = vmatprep.mubr.bf16.mxu0 0
  %53 = vmatmul.mubr.bf16.gmra.mrb[0].mxu0 %v18
  %v54 = vpop.f32.mrb[0].mxu0
  %v55 = vadd.f32 0.0, %v54
  %v56 = vpop.f32.mrb[0].mxu0
  %v57 = vpop.f32.mrb[0].mxu0
  %v58 = vadd.f32 0.0, %v57
  %v59 = vpop.f32.mrb[0].mxu0
  %60 = vdwg.mxu0
  %v61 = vmul.f32 %v55, 4.0
  %v62 = vmul.f32 %v58, 4.0
  %v63 = vsub.f32 %v61, 4.0
  %v64 = vsub.f32 %v62, 4.0
  %v65 = vld [vmem:[%s1] sm:$0x1]
  %v66 = vlaneseq
  %v67 = vshrl.u32 %v66, 7
  %v68 = vadd.s32 %v67, 8
  %v69 = vlaneseq
  %v70 = vand.u32 %v69, 127
  %s71 = smul.u32 0, 16
  %v72 = vstv %s71
  %v73 = vadd.s32 %v70, %v72
  %v74 = vsub.s32 %v67, %v73
  %v75 = vsub.s32 %v68, %v73
  %vm76 = vcmp.lt.s32.totalorder %v74, 0
  %v77 = vsub.s32 0, %v74
  %v78 = vsel %vm76, %v77, %v74
  %vm79 = vcmp.lt.s32.totalorder %v75, 0
  %v80 = vsub.s32 0, %v75
  %v81 = vsel %vm79, %v80, %v75
  %vm82 = vcmp.eq.s32.totalorder %v78, 8
  %vm83 = vcmp.eq.s32.totalorder %v81, 8
  %vm84 = vcmp.eq.s32.totalorder %v74, 0
  %vm85 = vcmp.eq.s32.totalorder %v75, 0
  %v86 = vsel %vm82, %v63, 0.0
  %v87 = vsel %vm83, %v64, 0.0
  %vm88 = vcmask 130048
  %v89 = vsel %vm88, %v86, 0.0
  %v90 = vsel %vm88, %v87, 0.0
  %v91 = vadd.f32 %v89, %v90
  %v92 = vrot.slane %v91, 4
  %v93 = vadd.f32 %v91, %v92
  %v94 = vrot.slane %v93, 2
  %v95 = vadd.f32 %v93, %v94
  %v96 = vrot.slane %v95, 1
  %v97 = vadd.f32 %v95, %v96
  %v98 = vsel %vm84, %v63, 0.0
  %v99 = vsel %vm85, %v64, 0.0
  %v100 = vsel %vm88, %v98, 0.0
  %v101 = vsel %vm88, %v99, 0.0
  %v102 = vadd.f32 %v100, %v101
  %v103 = vrot.slane %v102, 4
  %v104 = vadd.f32 %v102, %v103
  %v105 = vrot.slane %v104, 2
  %v106 = vadd.f32 %v104, %v105
  %v107 = vrot.slane %v106, 1
  %v108 = vadd.f32 %v106, %v107
  %v109 = vmul.f32 %v63, 1.442695
  %v110 = vpow.pop %v109
  %v111 = vmul.f32 %v64, 1.442695
  %v112 = vpow.pop %v111
  %v113 = vsel %vm88, %v110, 0.0
  %v114 = vsel %vm88, %v112, 0.0
  %v115 = vadd.f32 %v113, %v114
  %v116 = vrot.slane %v115, 4
  %v117 = vadd.f32 %v115, %v116
  %v118 = vrot.slane %v117, 2
  %v119 = vadd.f32 %v117, %v118
  %v120 = vrot.slane %v119, 1
  %v121 = vadd.f32 %v119, %v120
  %v122 = vmul.f32 %v97, 1.442695
  %v123 = vpow.pop %v122
  %v124 = vmul.f32 %v108, 1.442695
  %v125 = vpow.pop %v124
  %v126 = vsub.f32 %v121, %v125
  %v127 = vsub.f32 %v126, %v123
  %v128 = vmul.f32 %v127, %v65
  %v129 = vsub.f32 %v128, %v97
  %vm130 = vcmask 122880
  %131 = vst.msk [vmem:[%s2] sm:$0x1] %vm130, %v123
  %132 = vst.msk [vmem:[%s2 + $0x1] sm:$0x1] %vm130, %v127
  %133 = vst.msk [vmem:[%s2 + $0x2] sm:$0x1] %vm130, %v129
  // Predicated region
  $region10: #{exponential_loss.1} parent=0 // pred_check
    _
  $region11: #{exponential_loss.1} parent=0 // pred_check_branch
    %135 = sbr.rel (0) target = $region13
  $region12: #{exponential_loss.1} parent=0 // pred_region
    _
  $region13: #{exponential_loss.1} parent=0 // pred_fallthru
    _
  // Predicated region
  $region14: #{exponential_loss.1} parent=0 // pred_check
    _
  $region15: #{exponential_loss.1} parent=0 // pred_check_branch
    %137 = sbr.rel (0) target = $region17
  $region16: #{exponential_loss.1} parent=0 // pred_region
    _
  $region17: #{exponential_loss.1} parent=0 // pred_fallthru
    _

</llo_original>
